<compile_context>
chip_gen: v7x
topology: tpu7x:2x2x1
jax: 0.10.0
libtpu: 0.0.40
codegen_flags: <defaults>
</compile_context>

<pallas_src>
import functools

import jax
import jax.numpy as jnp
from jax.experimental import pallas as pl
from jax.experimental.pallas import tpu as pltpu

LANES = 128
MAX_BLOCK_BYTES = 8 * 1024 * 1024     # per-input block (f32: 16384 rows x 128)
VMEM_LIMIT_BYTES = 48 * 1024 * 1024   # 2 inputs x 2 buffers x 8 MiB = 32 MiB used
SMALL_N_FALLBACK = 1 << 18            # below this, plain XLA wins on latency


def _l1_partial_kernel(x_ref, y_ref, o_ref, *, rows, tile_rows,
                       steps_per_split, num_row_blocks, needs_mask):
    s = pl.program_id(0)   # split (one partial-output block per split)
    i = pl.program_id(1)   # reduction steps within the split (axis last)
    block_idx = s * steps_per_split + i

    @pl.when(i == 0)
    def _():
        o_ref[...] = jnp.zeros_like(o_ref)

    def absdiff():
        # Cast in-kernel so HBM traffic stays in the native input dtype.
        return jnp.abs(x_ref[...].astype(jnp.float32)
                       - y_ref[...].astype(jnp.float32))

    def accumulate(t):
        if tile_rows % 8 == 0:
            # Fold sublane groups onto the resident (8,128) accumulator:
            # pure VPU adds, hidden under the DMA of the next tile.
            partial = t.reshape(tile_rows // 8, 8, LANES).sum(axis=0)
            o_ref[...] += partial.reshape(1, 8, LANES)
        else:
            # Tiny single-block case (rows not a multiple of 8): one
            # cross-sublane reduce is fine.
            o_ref[0:1, 0:1, :] += t.sum(axis=0, keepdims=True)[None]

    if not needs_mask:
        accumulate(absdiff())
    else:
        # Mask is only needed on the single boundary block; gate it with
        # pl.when so the streaming common path pays zero extra VALU work.
        @pl.when(block_idx < num_row_blocks - 1)
        def _():
            accumulate(absdiff())

        @pl.when(block_idx == num_row_blocks - 1)
        def _():
            row_ids = jax.lax.broadcasted_iota(jnp.int32, (tile_rows, LANES), 0)
            global_rows = block_idx * tile_rows + row_ids
            t = jnp.where(global_rows < rows, absdiff(), jnp.float32(0.0))
            accumulate(t)


def l1_loss(x, y, *, small_input_fallback=True):
    """Computes mean(|x - y|) — matches torch.abs(x - y).mean()."""
    assert x.shape == y.shape, "x and y must have the same shape"
    n = x.size
    if n == 0:
        return jnp.float32(jnp.nan)  # torch mean of empty tensor is nan

    if small_input_fallback and n < SMALL_N_FALLBACK:
        # Tiny tensors: fused XLA reduction beats pallas_call fixed overhead.
        return jnp.mean(jnp.abs(x.astype(jnp.float32) - y.astype(jnp.float32)))

    xf = x.reshape(-1)
    yf = y.reshape(-1)

    rows = n // LANES
    rem = n % LANES
    tail_sum = jnp.float32(0.0)
    if rem:
        # No full-array pad copy: kernel handles the lane-aligned prefix,
        # the <128-element tail is a tiny XLA sum added to the partials.
        tail_sum = jnp.sum(jnp.abs(
            xf[rows * LANES:].astype(jnp.float32)
            - yf[rows * LANES:].astype(jnp.float32)))
        xf = xf[:rows * LANES]
        yf = yf[:rows * LANES]

    if rows == 0:
        return tail_sum / jnp.float32(n)

    x2 = xf.reshape(rows, LANES)
    y2 = yf.reshape(rows, LANES)

    itemsize = jnp.dtype(x.dtype).itemsize
    max_tile_rows = max(8, MAX_BLOCK_BYTES // (LANES * itemsize))  # mult. of 8
    if rows >= max_tile_rows:
        tile_rows = max_tile_rows       # big streaming tile
    else:
        tile_rows = rows                # full-extent block: always legal

    num_row_blocks = pl.cdiv(rows, tile_rows)
    # Two partial-output blocks only when the blocks split evenly: each v7x
    # TensorCore can take its own half, while v5e/v6e (1 TC) never pay for
    # phantom blocks, redundant DMAs, or forced per-step masking.
    splits = 2 if (num_row_blocks >= 2 and num_row_blocks % 2 == 0) else 1
    steps_per_split = num_row_blocks // splits
    needs_mask = (rows % tile_rows) != 0  # single ragged boundary block

    kernel = functools.partial(
        _l1_partial_kernel,
        rows=rows,
        tile_rows=tile_rows,
        steps_per_split=steps_per_split,
        num_row_blocks=num_row_blocks,
        needs_mask=needs_mask,
    )

    def in_map(s, i):
        return (s * steps_per_split + i, 0)

    partials = pl.pallas_call(
        kernel,
        out_shape=jax.ShapeDtypeStruct((splits, 8, LANES), jnp.float32),
        grid_spec=pltpu.PrefetchScalarGridSpec(
            num_scalar_prefetch=0,
            grid=(splits, steps_per_split),
            in_specs=[
                pl.BlockSpec((tile_rows, LANES), in_map),
                pl.BlockSpec((tile_rows, LANES), in_map),
            ],
            out_specs=pl.BlockSpec((1, 8, LANES), lambda s, i: (s, 0, 0)),
        ),
        compiler_params=pltpu.CompilerParams(
            dimension_semantics=("parallel", "arbitrary"),
            vmem_limit_bytes=VMEM_LIMIT_BYTES,
        ),
        cost_estimate=pl.CostEstimate(
            flops=3 * rows * LANES,
            transcendentals=0,
            bytes_accessed=2 * rows * LANES * itemsize + splits * 8 * LANES * 4,
        ),
    )(x2, y2)

    # Tiny final reduction + mean in plain XLA.
    return (jnp.sum(partials) + tail_sum) / jnp.float32(n)


if __name__ == "__main__":
    key = jax.random.PRNGKey(0)
    kx, ky = jax.random.split(key)

    # Small shapes consistent with an elementwise loss module.
    shape = (2, 4, 16, 16)
    x = jax.random.normal(kx, shape, dtype=jnp.float32)
    y = jax.random.normal(ky, shape, dtype=jnp.float32)

    # Force the Pallas path so the kernel itself is exercised at this size.
    kernel_fn = jax.jit(functools.partial(l1_loss, small_input_fallback=False))

    loss = kernel_fn(x, y)
    jax.block_until_ready(loss)
    ref = jnp.mean(jnp.abs(x - y))
    assert jnp.allclose(loss, ref, rtol=1e-6, atol=1e-6), (loss, ref)

    # Unaligned element count (n % 128 != 0): aligned prefix via kernel,
    # tail via tiny XLA sum.
    shape2 = (3, 5, 7, 11)  # 1155 elements
    x2 = jax.random.normal(kx, shape2, dtype=jnp.float32)
    y2 = jax.random.normal(ky, shape2, dtype=jnp.float32)
    loss2 = kernel_fn(x2, y2)
    jax.block_until_ready(loss2)
    ref2 = jnp.mean(jnp.abs(x2 - y2))
    assert jnp.allclose(loss2, ref2, rtol=1e-6, atol=1e-6), (loss2, ref2)

    # Default entry point (small-input fallback) also matches.
    loss3 = jax.jit(l1_loss)(x, y)
    jax.block_until_ready(loss3)
    assert jnp.allclose(loss3, ref, rtol=1e-6, atol=1e-6), (loss3, ref)

    print("KERNEL_OK")
</pallas_src>

<mosaic_0001>
module attributes {stable_mosaic.version = 11 : i64} {
  func.func @_l1_partial_kernel(%arg0: i32, %arg1: i32, %arg2: memref<16x128xf32, #tpu.memory_space<vmem>>, %arg3: memref<16x128xf32, #tpu.memory_space<vmem>>, %arg4: memref<1x8x128xf32, #tpu.memory_space<vmem>>) attributes {dimension_semantics = [#tpu.dimension_semantics<parallel>, #tpu.dimension_semantics<arbitrary>], iteration_bounds = array<i64: 1, 1>, scalar_prefetch = 0 : i64, scratch_operands = 0 : i64, tpu.core_type = #tpu.core_type<tc>, window_params = [{transform_indices = @transform_0, window_bounds = array<i64: 16, 128>}, {transform_indices = @transform_1, window_bounds = array<i64: 16, 128>}, {transform_indices = @transform_2, window_bounds = array<i64: 1, 8, 128>}]} {
    %c0_i32 = arith.constant 0 : i32
    %0 = arith.cmpi eq, %arg1, %c0_i32 : i32
    %1 = arith.extui %0 : i1 to i32
    %c0_i32_0 = arith.constant 0 : i32
    %2 = arith.cmpi ne, %1, %c0_i32_0 : i32
    scf.if %2 {
      %cst_10 = arith.constant 0.000000e+00 : f32
      %13 = vector.broadcast %cst_10 : f32 to vector<1x8x128xf32>
      %c0_11 = arith.constant 0 : index
      %c0_12 = arith.constant 0 : index
      %c0_13 = arith.constant 0 : index
      %14 = vector.load %arg4[%c0_11, %c0_12, %c0_13] : memref<1x8x128xf32, #tpu.memory_space<vmem>>, vector<1x8x128xf32>
      tpu.vector_store %arg4[%c0_11, %c0_12, %c0_13], %13 {strides = array<i32>} : memref<1x8x128xf32, #tpu.memory_space<vmem>>, vector<1x8x128xf32>,
    } else {
    }
    %c0 = arith.constant 0 : index
    %c0_1 = arith.constant 0 : index
    %3 = vector.load %arg2[%c0, %c0_1] : memref<16x128xf32, #tpu.memory_space<vmem>>, vector<16x128xf32>
    %c0_2 = arith.constant 0 : index
    %c0_3 = arith.constant 0 : index
    %4 = vector.load %arg3[%c0_2, %c0_3] : memref<16x128xf32, #tpu.memory_space<vmem>>, vector<16x128xf32>
    %5 = arith.subf %3, %4 : vector<16x128xf32>
    %6 = math.absf %5 : vector<16x128xf32>
    %7 = vector.shape_cast %6 : vector<16x128xf32> to vector<2x8x128xf32>
    %cst = arith.constant dense<0.000000e+00> : vector<8x128xf32>
    %8 = vector.multi_reduction <add>, %7, %cst [0] : vector<2x8x128xf32> to vector<8x128xf32>
    %c0_4 = arith.constant 0 : index
    %c0_5 = arith.constant 0 : index
    %c0_6 = arith.constant 0 : index
    %9 = vector.load %arg4[%c0_4, %c0_5, %c0_6] : memref<1x8x128xf32, #tpu.memory_space<vmem>>, vector<1x8x128xf32>
    %10 = vector.shape_cast %8 : vector<8x128xf32> to vector<1x8x128xf32>
    %11 = arith.addf %9, %10 : vector<1x8x128xf32>
    %c0_7 = arith.constant 0 : index
    %c0_8 = arith.constant 0 : index
    %c0_9 = arith.constant 0 : index
    %12 = vector.load %arg4[%c0_7, %c0_8, %c0_9] : memref<1x8x128xf32, #tpu.memory_space<vmem>>, vector<1x8x128xf32>
    tpu.vector_store %arg4[%c0_7, %c0_8, %c0_9], %11 {strides = array<i32>} : memref<1x8x128xf32, #tpu.memory_space<vmem>>, vector<1x8x128xf32>,
    return
  }
  func.func @transform_0(%arg0: i32, %arg1: i32) -> (i32, i32) {
    %c1_i32 = arith.constant 1 : i32
    %0 = arith.muli %arg0, %c1_i32 : i32
    %1 = arith.addi %0, %arg1 : i32
    %c0_i32 = arith.constant 0 : i32
    %c0_i32_0 = arith.constant 0 : i32
    return %1, %c0_i32 : i32, i32
  }
  func.func @transform_1(%arg0: i32, %arg1: i32) -> (i32, i32) {
    %c1_i32 = arith.constant 1 : i32
    %0 = arith.muli %arg0, %c1_i32 : i32
    %1 = arith.addi %0, %arg1 : i32
    %c0_i32 = arith.constant 0 : i32
    %c0_i32_0 = arith.constant 0 : i32
    return %1, %c0_i32 : i32, i32
  }
  func.func @transform_2(%arg0: i32, %arg1: i32) -> (i32, i32, i32) {
    %c0_i32 = arith.constant 0 : i32
    %c0_i32_0 = arith.constant 0 : i32
    %c0_i32_1 = arith.constant 0 : i32
    return %arg0, %c0_i32, %c0_i32_0 : i32, i32, i32
  }
}

</mosaic_0001>

<llo_original>
// kernel: l1_loss.1
$region0: #{l1_loss.1}
  #allocation0 [shape = 'u32[]', space=smem, size = 0x4, offset = 0x4, fixed_abs, tag = 'smem constant byte address 0x4 - core index']
  #allocation1 [shape = 'u32[144,128]{1,0:T(1,128)}', space=vmem, size = 0x12000, scoped, tag = 'internal scratch']
  %s0 = inlined_call_operand.vmem [shape: f32[16,128], index: 0, kind: input, shape index: {}]
  %s1 = inlined_call_operand.vmem [shape: f32[16,128], index: 1, kind: input, shape index: {}]
  %s2 = inlined_call_operand.vmem [shape: f32[1,8,128], index: 2, kind: output, shape index: {}]
  %s3 = sld [smem:[#allocation0]]
  $region22: #{l1_loss.1} parent=0
    _
  %s5 = ssub.s32 1, %s3
  %s6 = scalar_select 0, %s5, %s3
  // Predicated region
  $region2: #{l1_loss.1} parent=0 // pred_check
    _
  $region3: #{l1_loss.1} parent=0 // pred_check_branch
    %8 = sbr.rel (0) target = $region5
  $region4: #{l1_loss.1} parent=0 // pred_region
    %s9 = sadd.s32 0, 0
    %s10 = smul.u32 2, %s9
    %p11 = scmp.lt.s32.totalorder %s10, 1
    %s12 = scalar_select %p11, %s10, 1
    %s13 = smul.addr %s12, 8
    %s14 = scalar_lea.vmem %s0, %s13
    %s15 = sadd.s32 0, 0
    %s16 = smul.u32 2, %s15
  $region5: #{l1_loss.1} parent=0 // pred_fallthru
    _
  // Predicated region
  $region6: #{l1_loss.1} parent=0 // pred_check
    _
  $region7: #{l1_loss.1} parent=0 // pred_check_branch
    %18 = sbr.rel (0) target = $region9
  $region8: #{l1_loss.1} parent=0 // pred_region
    %s19 = sadd.s32 0, 0
    %s20 = smul.u32 2, %s19
    %p21 = scmp.lt.s32.totalorder %s20, 1
    %s22 = scalar_select %p21, %s20, 1
    %s23 = smul.addr %s22, 8
    %s24 = scalar_lea.vmem %s1, %s23
    %s25 = sadd.s32 0, 0
    %s26 = smul.u32 2, %s25
  $region9: #{l1_loss.1} parent=0 // pred_fallthru
    _
  %s27 = sadd.s32 0, 0
  %s28 = smul.u32 2, %s27
  %p29 = scmp.lt.s32.totalorder %s28, 1
  %s30 = scalar_select %p29, %s28, 1
  %s31 = smul.addr %s30, 8
  %s32 = scalar_lea.vmem %s0, %s31
  %s33 = sadd.s32 0, 0
  %s34 = smul.u32 2, %s33
  %p35 = scmp.lt.s32.totalorder %s34, 1
  %s36 = scalar_select %p35, %s34, 1
  %s37 = smul.addr %s36, 8
  %s38 = scalar_lea.vmem %s1, %s37
  %s39 = sadd.s32 0, 0
  %s40 = smul.u32 2, %s39
  %p41 = scmp.lt.s32.totalorder %s40, 1
  %s42 = scalar_select %p41, %s40, 1
  %s43 = smul.addr %s42, 8
  %s44 = scalar_lea.vmem %s0, %s43
  %s45 = sadd.s32 0, 0
  %s46 = smul.u32 2, %s45
  %s47 = sadd.s32 0, 0
  %s48 = smul.u32 2, %s47
  %p49 = scmp.lt.s32.totalorder %s48, 1
  %s50 = scalar_select %p49, %s48, 1
  %s51 = smul.addr %s50, 8
  %s52 = scalar_lea.vmem %s1, %s51
  %s53 = sadd.s32 0, 0
  %s54 = smul.u32 2, %s53
  %p55 = scmp.eq.s32.totalorder 0, 0
  // Predicated region
  $region10: #{l1_loss.1} parent=0 // pred_check
    %p56 = pneg %p55
  $region11: #{l1_loss.1} parent=0 // pred_check_branch
    %58 = sbr.rel (%p56) target = $region13
  $region12: #{l1_loss.1} parent=0 // pred_region
    %59 = vst [vmem:[%s2] sm:$0xff] 0.0
  $region13: #{l1_loss.1} parent=0 // pred_fallthru
    _
  %v60 = vld [vmem:[%s44] sm:$0xff]
  %v61 = vld [vmem:[%s44 + $0x8] sm:$0xff]
  %v62 = vld [vmem:[%s52] sm:$0xff]
  %v63 = vld [vmem:[%s52 + $0x8] sm:$0xff]
  %v64 = vsub.f32 %v60, %v62
  %v65 = vsub.f32 %v61, %v63
  %v66 = vand.u32 2147483647, %v64
  %v67 = vand.u32 2147483647, %v65
  %v68 = vadd.f32 %v66, %v67
  %v69 = vld [vmem:[%s2] sm:$0xff]
  %v70 = vadd.f32 %v69, %v68
  %71 = vst [vmem:[%s2] sm:$0xff] %v70
  // Predicated region
  $region14: #{l1_loss.1} parent=0 // pred_check
    _
  $region15: #{l1_loss.1} parent=0 // pred_check_branch
    %73 = sbr.rel (0) target = $region17
  $region16: #{l1_loss.1} parent=0 // pred_region
    _
  $region17: #{l1_loss.1} parent=0 // pred_fallthru
    _
  // Predicated region
  $region18: #{l1_loss.1} parent=0 // pred_check
    _
  $region19: #{l1_loss.1} parent=0 // pred_check_branch
    %75 = sbr.rel (0) target = $region21
  $region20: #{l1_loss.1} parent=0 // pred_region
    _
  $region21: #{l1_loss.1} parent=0 // pred_fallthru
    _

</llo_original>
